<compile_context>
chip_gen: v5e
topology: v5e:2x2
jax: 0.10.0
libtpu: 0.0.40
codegen_flags: <defaults>
</compile_context>

<pallas_src>
import math
import functools

import jax
import jax.numpy as jnp
from jax import lax
from jax.experimental import pallas as pl
from jax.experimental.pallas import tpu as pltpu


def _round_up(x, m):
    return ((x + m - 1) // m) * m


def attention_kernel(xb_ref, xf_ref, wk_ref, bk_ref, wqv_ref, bqv_ref, o_ref,
                     *, scale, tr):
    r = pl.program_id(1)
    Cp = wk_ref.shape[0]

    xb = xb_ref[0]            # (tr, Cp)  rows of x for this K/output block
    xf = xf_ref[0]            # (Tp, Cp)  full sequence (for Q and V)

    # K projection for the row block only; fold the softmax scale in here
    # (O(tr*Cp) multiply instead of O(tr*Tp) on the score tile).
    k = (jnp.dot(xb, wk_ref[...], preferred_element_type=jnp.float32)
         + bk_ref[...]) * scale                                   # (tr, Cp)

    # Fused Q,V projection for the full sequence (one MXU op, one bias add).
    qv = jnp.dot(xf, wqv_ref[...], preferred_element_type=jnp.float32) \
        + bqv_ref[...]                                            # (Tp, 2Cp)
    q = qv[:, :Cp]                                                # (Tp, Cp)
    v = qv[:, Cp:]                                                # (Tp, Cp)

    # Scores: K @ Q^T, contracting the feature dims directly (no transpose).
    s = lax.dot_general(k, q, (((1,), (1,)), ((), ())),
                        preferred_element_type=jnp.float32)       # (tr, Tp)

    # Causal mask from rank-1 iotas; row index is offset by the block start.
    row = lax.broadcasted_iota(jnp.int32, (tr, 1), 0) + r * tr
    col = lax.broadcasted_iota(jnp.int32, (1, s.shape[-1]), 1)
    s = jnp.where(col <= row, s, -jnp.inf)

    # Softmax over the last dim; reciprocal goes to the (otherwise idle) EUP.
    m = jnp.max(s, axis=-1, keepdims=True)
    e = jnp.exp(s - m)
    p = e * pl.reciprocal(jnp.sum(e, axis=-1, keepdims=True), approx=True)

    o_ref[0] = jnp.dot(p, v, preferred_element_type=jnp.float32).astype(o_ref.dtype)


def attention(x, wk, bk, wq, bq, wv, bv):
    """x: (B, T, C) float32; weights: (C, C) PyTorch layout; biases: (C,)."""
    B, T, C = x.shape
    scale = 1.0 / math.sqrt(C)          # layer_size == C, as in the module

    # Lane-dense feature dim; tile the sequence dim.
    Cp = _round_up(C, 128)
    tr = 128 if T >= 128 else _round_up(T, 8)
    Tp = _round_up(T, tr)
    nR = Tp // tr

    dt = x.dtype
    # Zero-padded input (padded rows/cols are harmless: padded cols of K/Q/V
    # are zero, padded sequence columns are always causally masked for valid
    # rows, and padded output rows are sliced off).
    x_p = jnp.zeros((B, Tp, Cp), dt).at[:, :T, :C].set(x)

    def pad_wt(w):                       # (C, C) torch layout -> padded W^T
        return jnp.zeros((Cp, Cp), dt).at[:C, :C].set(w.T)

    def pad_b(b):
        return jnp.zeros((1, Cp), dt).at[0, :C].set(b)

    wk_t = pad_wt(wk)                                        # (Cp, Cp)
    wqv_t = jnp.concatenate([pad_wt(wq), pad_wt(wv)], axis=1)  # (Cp, 2Cp)
    bk_p = pad_b(bk)                                         # (1, Cp)
    bqv_p = jnp.concatenate([pad_b(bq), pad_b(bv)], axis=1)  # (1, 2Cp)

    xb_spec = pl.BlockSpec((1, tr, Cp), lambda b, r: (b, r, 0))
    xf_spec = pl.BlockSpec((1, Tp, Cp), lambda b, r: (b, 0, 0))
    wk_spec = pl.BlockSpec((Cp, Cp), lambda b, r: (0, 0))
    wqv_spec = pl.BlockSpec((Cp, 2 * Cp), lambda b, r: (0, 0))
    bk_spec = pl.BlockSpec((1, Cp), lambda b, r: (0, 0))
    bqv_spec = pl.BlockSpec((1, 2 * Cp), lambda b, r: (0, 0))
    out_spec = pl.BlockSpec((1, tr, Cp), lambda b, r: (b, r, 0))

    flops_per_step = (2 * tr * Cp * Cp          # K block projection
                      + 2 * Tp * Cp * 2 * Cp    # fused Q,V projection
                      + 2 * tr * Tp * Cp        # K @ Q^T
                      + 2 * tr * Tp * Cp)       # P @ V
    cost = pl.CostEstimate(
        flops=B * nR * flops_per_step,
        transcendentals=B * Tp * Tp,
        bytes_accessed=4 * (2 * B * Tp * Cp      # x (read twice) + out
                            + 3 * Cp * Cp + 3 * Cp))

    out_p = pl.pallas_call(
        functools.partial(attention_kernel, scale=scale, tr=tr),
        out_shape=jax.ShapeDtypeStruct((B, Tp, Cp), dt),
        grid=(B, nR),
        in_specs=[xb_spec, xf_spec, wk_spec, bk_spec, wqv_spec, bqv_spec],
        out_specs=out_spec,
        compiler_params=pltpu.CompilerParams(
            dimension_semantics=("parallel", "parallel")),
        cost_estimate=cost,
    )(x_p, x_p, wk_t, bk_p, wqv_t, bqv_p)

    return out_p[:, :T, :C]


def attention_ref(x, wk, bk, wq, bq, wv, bv):
    """Pure-JAX reference mirroring the PyTorch forward."""
    B, T, C = x.shape
    k = x @ wk.T + bk
    q = x @ wq.T + bq
    v = x @ wv.T + bv
    s = jnp.einsum("btc,buc->btu", k, q) / math.sqrt(C)
    mask = jnp.tril(jnp.ones((T, T)))
    s = jnp.where(mask == 0, -jnp.inf, s)
    p = jax.nn.softmax(s, axis=-1)
    return jnp.einsum("btu,buc->btc", p, v)


if __name__ == "__main__":
    # Small shapes consistent with the module: layer_size=32, block_size>=T
    B, T, C = 2, 8, 32

    key = jax.random.PRNGKey(0)
    kx, kwk, kbk, kwq, kbq, kwv, kbv = jax.random.split(key, 7)

    bound = 1.0 / math.sqrt(C)
    x = jax.random.normal(kx, (B, T, C), dtype=jnp.float32)
    wk = jax.random.uniform(kwk, (C, C), jnp.float32, -bound, bound)
    bk = jax.random.uniform(kbk, (C,),   jnp.float32, -bound, bound)
    wq = jax.random.uniform(kwq, (C, C), jnp.float32, -bound, bound)
    bq = jax.random.uniform(kbq, (C,),   jnp.float32, -bound, bound)
    wv = jax.random.uniform(kwv, (C, C), jnp.float32, -bound, bound)
    bv = jax.random.uniform(kbv, (C,),   jnp.float32, -bound, bound)

    out = attention(x, wk, bk, wq, bq, wv, bv)
    out = jax.block_until_ready(out)

    ref = attention_ref(x, wk, bk, wq, bq, wv, bv)
    assert out.shape == (B, T, C)
    # Tolerance loosened slightly for the EUP approximate reciprocal.
    assert jnp.allclose(out, ref, atol=2e-3, rtol=2e-3), "mismatch vs reference"

    print("KERNEL_OK")
</pallas_src>

<mosaic_0001>
module attributes {stable_mosaic.version = 11 : i64} {
  func.func @attention_kernel(%arg0: i32, %arg1: i32, %arg2: memref<1x8x128xf32, #tpu.memory_space<vmem>>, %arg3: memref<1x8x128xf32, #tpu.memory_space<vmem>>, %arg4: memref<128x128xf32, #tpu.memory_space<vmem>>, %arg5: memref<1x128xf32, #tpu.memory_space<vmem>>, %arg6: memref<128x256xf32, #tpu.memory_space<vmem>>, %arg7: memref<1x256xf32, #tpu.memory_space<vmem>>, %arg8: memref<1x8x128xf32, #tpu.memory_space<vmem>>) attributes {dimension_semantics = [#tpu.dimension_semantics<parallel>, #tpu.dimension_semantics<parallel>], iteration_bounds = array<i64: 2, 1>, scalar_prefetch = 0 : i64, scratch_operands = 0 : i64, tpu.core_type = #tpu.core_type<tc>, window_params = [{transform_indices = @transform_0, window_bounds = array<i64: 1, 8, 128>}, {transform_indices = @transform_1, window_bounds = array<i64: 1, 8, 128>}, {pipeline_mode = #tpu.pipeline_mode<synchronous>, transform_indices = @transform_2, window_bounds = array<i64: 128, 128>}, {pipeline_mode = #tpu.pipeline_mode<synchronous>, transform_indices = @transform_3, window_bounds = array<i64: 1, 128>}, {pipeline_mode = #tpu.pipeline_mode<synchronous>, transform_indices = @transform_4, window_bounds = array<i64: 128, 256>}, {pipeline_mode = #tpu.pipeline_mode<synchronous>, transform_indices = @transform_5, window_bounds = array<i64: 1, 256>}, {transform_indices = @transform_6, window_bounds = array<i64: 1, 8, 128>}]} {
    %c0 = arith.constant 0 : index
    %c0_0 = arith.constant 0 : index
    %c0_1 = arith.constant 0 : index
    %0 = vector.load %arg2[%c0, %c0_0, %c0_1] : memref<1x8x128xf32, #tpu.memory_space<vmem>>, vector<1x8x128xf32>
    %1 = vector.shape_cast %0 : vector<1x8x128xf32> to vector<8x128xf32>
    %c0_2 = arith.constant 0 : index
    %c0_3 = arith.constant 0 : index
    %c0_4 = arith.constant 0 : index
    %2 = vector.load %arg3[%c0_2, %c0_3, %c0_4] : memref<1x8x128xf32, #tpu.memory_space<vmem>>, vector<1x8x128xf32>
    %3 = vector.shape_cast %2 : vector<1x8x128xf32> to vector<8x128xf32>
    %c0_5 = arith.constant 0 : index
    %c0_6 = arith.constant 0 : index
    %4 = vector.load %arg4[%c0_5, %c0_6] : memref<128x128xf32, #tpu.memory_space<vmem>>, vector<128x128xf32>
    %cst = arith.constant dense<0.000000e+00> : vector<8x128xf32>
    %5 = tpu.matmul %1, %4, %cst {dimension_numbers = #tpu.dot_dimension_numbers<[1], [0], [0], [1], [0, 0, 1, 1], [], []>} : vector<8x128xf32>, vector<128x128xf32>, vector<8x128xf32> -> vector<8x128xf32>
    %c0_7 = arith.constant 0 : index
    %c0_8 = arith.constant 0 : index
    %6 = vector.load %arg5[%c0_7, %c0_8] : memref<1x128xf32, #tpu.memory_space<vmem>>, vector<1x128xf32>
    %7 = vector.broadcast %6 : vector<1x128xf32> to vector<8x128xf32>
    %8 = arith.addf %5, %7 : vector<8x128xf32>
    %cst_9 = arith.constant 0.176776692 : f32
    %9 = vector.broadcast %cst_9 : f32 to vector<8x128xf32>
    %10 = arith.mulf %8, %9 : vector<8x128xf32>
    %c0_10 = arith.constant 0 : index
    %c0_11 = arith.constant 0 : index
    %11 = vector.load %arg6[%c0_10, %c0_11] : memref<128x256xf32, #tpu.memory_space<vmem>>, vector<128x256xf32>
    %cst_12 = arith.constant dense<0.000000e+00> : vector<8x256xf32>
    %12 = tpu.matmul %3, %11, %cst_12 {dimension_numbers = #tpu.dot_dimension_numbers<[1], [0], [0], [1], [0, 0, 1, 1], [], []>} : vector<8x128xf32>, vector<128x256xf32>, vector<8x256xf32> -> vector<8x256xf32>
    %c0_13 = arith.constant 0 : index
    %c0_14 = arith.constant 0 : index
    %13 = vector.load %arg7[%c0_13, %c0_14] : memref<1x256xf32, #tpu.memory_space<vmem>>, vector<1x256xf32>
    %14 = vector.broadcast %13 : vector<1x256xf32> to vector<8x256xf32>
    %15 = arith.addf %12, %14 : vector<8x256xf32>
    %16 = vector.extract_strided_slice %15 {offsets = [0, 0], sizes = [8, 128], strides = [1, 1]} : vector<8x256xf32> to vector<8x128xf32>
    %17 = vector.extract_strided_slice %15 {offsets = [0, 128], sizes = [8, 128], strides = [1, 1]} : vector<8x256xf32> to vector<8x128xf32>
    %cst_15 = arith.constant dense<0.000000e+00> : vector<8x8xf32>
    %18 = tpu.matmul %10, %16, %cst_15 {dimension_numbers = #tpu.dot_dimension_numbers<[1], [1], [0], [0], [0, 0, 1, 0], [], []>} : vector<8x128xf32>, vector<8x128xf32>, vector<8x8xf32> -> vector<8x8xf32>
    %19 = tpu.iota {dimensions = array<i32: 0>} : vector<8x1xi32>
    %c8_i32 = arith.constant 8 : i32
    %20 = arith.muli %arg1, %c8_i32 : i32
    %21 = vector.broadcast %20 : i32 to vector<8x1xi32>
    %22 = arith.addi %19, %21 : vector<8x1xi32>
    %23 = tpu.iota {dimensions = array<i32: 1>} : vector<1x8xi32>
    %24 = vector.broadcast %23 : vector<1x8xi32> to vector<8x8xi32>
    %25 = vector.broadcast %22 : vector<8x1xi32> to vector<8x8xi32>
    %26 = arith.cmpi sle, %24, %25 : vector<8x8xi32>
    %cst_16 = arith.constant 0xFF800000 : f32
    %27 = vector.broadcast %cst_16 : f32 to vector<8x8xf32>
    %28 = arith.select %26, %18, %27 : vector<8x8xi1>, vector<8x8xf32>
    %cst_17 = arith.constant dense<0xFF800000> : vector<8xf32>
    %29 = vector.multi_reduction <maximumf>, %28, %cst_17 [1] : vector<8x8xf32> to vector<8xf32>
    %30 = vector.shape_cast %29 : vector<8xf32> to vector<8x1xf32>
    %31 = vector.broadcast %30 : vector<8x1xf32> to vector<8x8xf32>
    %32 = arith.subf %28, %31 : vector<8x8xf32>
    %33 = math.exp %32 : vector<8x8xf32>
    %cst_18 = arith.constant dense<0.000000e+00> : vector<8xf32>
    %34 = vector.multi_reduction <add>, %33, %cst_18 [1] : vector<8x8xf32> to vector<8xf32>
    %35 = vector.shape_cast %34 : vector<8xf32> to vector<8x1xf32>
    %36 = tpu.reciprocal %35 {approx = true} : vector<8x1xf32> -> vector<8x1xf32>
    %37 = vector.broadcast %36 : vector<8x1xf32> to vector<8x8xf32>
    %38 = arith.mulf %33, %37 : vector<8x8xf32>
    %cst_19 = arith.constant dense<0.000000e+00> : vector<8x128xf32>
    %39 = tpu.matmul %38, %17, %cst_19 {dimension_numbers = #tpu.dot_dimension_numbers<[1], [0], [0], [1], [0, 0, 1, 1], [], []>} : vector<8x8xf32>, vector<8x128xf32>, vector<8x128xf32> -> vector<8x128xf32>
    %c0_20 = arith.constant 0 : index
    %c0_21 = arith.constant 0 : index
    %c0_22 = arith.constant 0 : index
    %40 = vector.load %arg8[%c0_20, %c0_21, %c0_22] : memref<1x8x128xf32, #tpu.memory_space<vmem>>, vector<1x8x128xf32>
    %41 = vector.shape_cast %40 : vector<1x8x128xf32> to vector<8x128xf32>
    %42 = vector.shape_cast %39 : vector<8x128xf32> to vector<1x8x128xf32>
    tpu.vector_store %arg8[%c0_20, %c0_21, %c0_22], %42 {strides = array<i32>} : memref<1x8x128xf32, #tpu.memory_space<vmem>>, vector<1x8x128xf32>,
    return
  }
  func.func @transform_0(%arg0: i32, %arg1: i32) -> (i32, i32, i32) {
    %c0_i32 = arith.constant 0 : i32
    %c0_i32_0 = arith.constant 0 : i32
    return %arg0, %arg1, %c0_i32 : i32, i32, i32
  }
  func.func @transform_1(%arg0: i32, %arg1: i32) -> (i32, i32, i32) {
    %c0_i32 = arith.constant 0 : i32
    %c0_i32_0 = arith.constant 0 : i32
    %c0_i32_1 = arith.constant 0 : i32
    return %arg0, %c0_i32, %c0_i32_0 : i32, i32, i32
  }
  func.func @transform_2(%arg0: i32, %arg1: i32) -> (i32, i32) {
    %c0_i32 = arith.constant 0 : i32
    %c0_i32_0 = arith.constant 0 : i32
    %c0_i32_1 = arith.constant 0 : i32
    return %c0_i32, %c0_i32_0 : i32, i32
  }
  func.func @transform_3(%arg0: i32, %arg1: i32) -> (i32, i32) {
    %c0_i32 = arith.constant 0 : i32
    %c0_i32_0 = arith.constant 0 : i32
    %c0_i32_1 = arith.constant 0 : i32
    return %c0_i32, %c0_i32_0 : i32, i32
  }
  func.func @transform_4(%arg0: i32, %arg1: i32) -> (i32, i32) {
    %c0_i32 = arith.constant 0 : i32
    %c0_i32_0 = arith.constant 0 : i32
    %c0_i32_1 = arith.constant 0 : i32
    return %c0_i32, %c0_i32_0 : i32, i32
  }
  func.func @transform_5(%arg0: i32, %arg1: i32) -> (i32, i32) {
    %c0_i32 = arith.constant 0 : i32
    %c0_i32_0 = arith.constant 0 : i32
    %c0_i32_1 = arith.constant 0 : i32
    return %c0_i32, %c0_i32_0 : i32, i32
  }
  func.func @transform_6(%arg0: i32, %arg1: i32) -> (i32, i32, i32) {
    %c0_i32 = arith.constant 0 : i32
    %c0_i32_0 = arith.constant 0 : i32
    return %arg0, %arg1, %c0_i32 : i32, i32, i32
  }
}

</mosaic_0001>

<llo_original>
// kernel: tpu_custom_call.1
$region0: #{tpu_custom_call.1}
  #allocation0 [shape = 'u32[]', space=smem, size = 0x4, offset = 0x4, fixed_abs, tag = 'smem constant byte address 0x4 - core index']
  #allocation1 [shape = 'u32[72,128]{1,0:T(1,128)}', space=vmem, size = 0x9000, scoped, tag = 'internal scratch']
  %s0 = inlined_call_operand.hbm [shape: f32[2,8,128], index: 0, kind: input, shape index: {}]
  %s1 = inlined_call_operand.hbm [shape: f32[2,8,128], index: 1, kind: input, shape index: {}]
  %s2 = inlined_call_operand.hbm [shape: f32[128,128], index: 2, kind: input, shape index: {}]
  %s3 = inlined_call_operand.vmem [shape: f32[1,128], index: 3, kind: input, shape index: {}]
  %s4 = inlined_call_operand.hbm [shape: f32[128,256], index: 4, kind: input, shape index: {}]
  %s5 = inlined_call_operand.vmem [shape: f32[1,256], index: 5, kind: input, shape index: {}]
  %s6 = inlined_call_operand.hbm [shape: f32[2,8,128], index: 6, kind: output, shape index: {}]
  %s7 = sld [smem:[#allocation0]]
  $region73: #{tpu_custom_call.1} parent=0
    _
  %s9 = ssub.s32 1, %s7
  %s10 = scalar_select 0, %s9, %s7
  $region1: #{tpu_custom_call.1} parent=0
    #allocation2 [shape = 'u8[8192]{0}', space=vmem, size = 0x2000, scoped, tag = 'input window, operand 0']
    #allocation3 [shape = 's32[2]{0}', space=sflag, size = 0x8, scoped, tag = 'scoped memory for tpu_custom_call.1']
    #allocation4 [shape = 's32[2]{0}', space=sflag, size = 0x8, scoped, tag = 'scoped memory for tpu_custom_call.1']
    #allocation5 [shape = 'u8[8192]{0}', space=vmem, size = 0x2000, scoped, tag = 'input window, operand 1']
    #allocation6 [shape = 's32[2]{0}', space=sflag, size = 0x8, scoped, tag = 'scoped memory for tpu_custom_call.1']
    #allocation7 [shape = 'u8[65536]{0}', space=vmem, size = 0x10000, scoped, tag = 'input window, operand 2, single buffered']
    #allocation8 [shape = 'u8[131072]{0}', space=vmem, size = 0x20000, scoped, tag = 'input window, operand 4, single buffered']
    #allocation9 [shape = 's32[1]{0}', space=sflag, size = 0x4, scoped, tag = 'scoped memory for tpu_custom_call.1']
    #allocation10 [shape = 'u8[8192]{0}', space=vmem, size = 0x2000, scoped, tag = 'output window, operand 0']
    %11 = vsyncpa [#allocation3], 0
    %s12 = scalar_lea.sflag [#allocation3], 1
    %13 = vsyncpa %s12, 0
    %14 = vsyncpa [#allocation6], 0
    %s15 = scalar_lea.sflag [#allocation6], 1
    %16 = vsyncpa %s15, 0
    %17 = vsyncpa [#allocation9], 0
    %18 = vsyncpa [#allocation4], 0
    %s19 = scalar_lea.sflag [#allocation4], 1
    %20 = vsyncpa %s19, 0
    loop: start=0, step=1, limit=4
    $region2: #{tpu_custom_call.1} parent=1 // loop_pre_header
      _
    $region3: #{tpu_custom_call.1} parent=1 // loop_header
      %s22 = sphi 0, %s26
      %p23 = scmp.ge.s32.totalorder %s22, 4
      %s29 = sphi 0, %s41
      %s30 = sphi 0, %s37
      %s31 = sphi 0, %s29
      %s32 = sphi 0, %s30
      %s33 = sphi 0, %s31
      %s34 = sphi 0, %s32
      %s46 = sphi 0, %s48
      %s49 = sphi 0, %s46
      %s50 = sphi 0, %s49
      %s66 = sphi 0, %s50
      %s72 = sphi 0, %s74
      %s75 = sphi 0, %s72
      %s76 = sphi 0, %s75
      %s92 = sphi 0, %s76
      %s96 = sphi 0, %s96
      %s98 = sphi 0, %s96
      %s99 = sphi 0, %s98
      %s113 = sphi 0, %s99
      %s117 = sphi 0, %s117
      %s119 = sphi 0, %s117
      %s120 = sphi 0, %s119
      %s134 = sphi 0, %s120
      %s138 = sphi 0, %s138
      %s140 = sphi 0, %s138
      %s141 = sphi 0, %s140
      %s155 = sphi 0, %s141
      %s159 = sphi 0, %s159
      %s161 = sphi 0, %s159
      %s162 = sphi 0, %s161
      %s176 = sphi 0, %s162
      %s184 = sphi 0, %s186
      %s187 = sphi 0, %s184
      %s188 = sphi 0, %s187
      %s204 = sphi 0, %s188
    $region4: #{tpu_custom_call.1} parent=1 // loop_header_branch
      %25 = sbr.rel (%p23) target = $region8
    $region5: #{tpu_custom_call.1} parent=1 // loop_body
      %s27 = ssub.s32 %s22, 1
      %s28 = ssub.s32 %s22, 2
      %s35 = sadd.s32 1, %s30
      %p36 = scmp.ge.s32.totalorder %s35, 1
      %s37 = scalar_select %p36, 0, %s35
      %s38 = sadd.s32 1, %s29
      %s39 = scalar_select %p36, %s38, %s29
      %p40 = scmp.ge.s32.totalorder %s39, 2
      %s41 = scalar_select %p40, 0, %s39
      %s42 = ssub.s32 %s29, %s41
      %s43 = ssub.s32 %s30, %s37
      %s44 = sor.u32 %s42, %s43
      %p45 = scmp.eq.s32.totalorder %s44, 0
      %s47 = sadd.s32 %s46, 1
      %s48 = scalar_select %p45, %s46, %s47
      %p51 = pneg %p45
      %p52 = scmp.eq.s32.totalorder %s22, 1
      %p53 = por %p51, %p52
      %p54 = scmp.ne.s32.totalorder %s46, %s49
      %p55 = scmp.eq.s32.totalorder %s22, 0
      %p56 = por %p54, %p55
      %p57 = scmp.ne.s32.totalorder %s46, %s49
      %p58 = scmp.eq.s32.totalorder %s27, 1
      %p59 = por %p57, %p58
      %p60 = scmp.ne.s32.totalorder %s49, %s50
      %p61 = scmp.eq.s32.totalorder %s27, 0
      %p62 = por %p60, %p61
      %p63 = scmp.ne.s32.totalorder %s49, %s50
      %p64 = scmp.eq.s32.totalorder %s28, 1
      %p65 = por %p63, %p64
      %p67 = scmp.ne.s32.totalorder %s50, %s66
      %p68 = scmp.eq.s32.totalorder %s28, 0
      %p69 = por %p67, %p68
      %s70 = ssub.s32 %s29, %s41
      %p71 = scmp.eq.s32.totalorder %s70, 0
      %s73 = sadd.s32 %s72, 1
      %s74 = scalar_select %p71, %s72, %s73
      %p77 = pneg %p71
      %p78 = scmp.eq.s32.totalorder %s22, 1
      %p79 = por %p77, %p78
      %p80 = scmp.ne.s32.totalorder %s72, %s75
      %p81 = scmp.eq.s32.totalorder %s22, 0
      %p82 = por %p80, %p81
      %p83 = scmp.ne.s32.totalorder %s72, %s75
      %p84 = scmp.eq.s32.totalorder %s27, 1
      %p85 = por %p83, %p84
      %p86 = scmp.ne.s32.totalorder %s75, %s76
      %p87 = scmp.eq.s32.totalorder %s27, 0
      %p88 = por %p86, %p87
      %p89 = scmp.ne.s32.totalorder %s75, %s76
      %p90 = scmp.eq.s32.totalorder %s28, 1
      %p91 = por %p89, %p90
      %p93 = scmp.ne.s32.totalorder %s76, %s92
      %p94 = scmp.eq.s32.totalorder %s28, 0
      %p95 = por %p93, %p94
      %s97 = sadd.s32 %s96, 1
      %p100 = scmp.eq.s32.totalorder %s22, 1
      %p101 = scmp.ne.s32.totalorder %s96, %s98
      %p102 = scmp.eq.s32.totalorder %s22, 0
      %p103 = por %p101, %p102
      %p104 = scmp.ne.s32.totalorder %s96, %s98
      %p105 = scmp.eq.s32.totalorder %s27, 1
      %p106 = por %p104, %p105
      %p107 = scmp.ne.s32.totalorder %s98, %s99
      %p108 = scmp.eq.s32.totalorder %s27, 0
      %p109 = por %p107, %p108
      %p110 = scmp.ne.s32.totalorder %s98, %s99
      %p111 = scmp.eq.s32.totalorder %s28, 1
      %p112 = por %p110, %p111
      %p114 = scmp.ne.s32.totalorder %s99, %s113
      %p115 = scmp.eq.s32.totalorder %s28, 0
      %p116 = por %p114, %p115
      %s118 = sadd.s32 %s117, 1
      %p121 = scmp.eq.s32.totalorder %s22, 1
      %p122 = scmp.ne.s32.totalorder %s117, %s119
      %p123 = scmp.eq.s32.totalorder %s22, 0
      %p124 = por %p122, %p123
      %p125 = scmp.ne.s32.totalorder %s117, %s119
      %p126 = scmp.eq.s32.totalorder %s27, 1
      %p127 = por %p125, %p126
      %p128 = scmp.ne.s32.totalorder %s119, %s120
      %p129 = scmp.eq.s32.totalorder %s27, 0
      %p130 = por %p128, %p129
      %p131 = scmp.ne.s32.totalorder %s119, %s120
      %p132 = scmp.eq.s32.totalorder %s28, 1
      %p133 = por %p131, %p132
      %p135 = scmp.ne.s32.totalorder %s120, %s134
      %p136 = scmp.eq.s32.totalorder %s28, 0
      %p137 = por %p135, %p136
      %s139 = sadd.s32 %s138, 1
      %p142 = scmp.eq.s32.totalorder %s22, 1
      %p143 = scmp.ne.s32.totalorder %s138, %s140
      %p144 = scmp.eq.s32.totalorder %s22, 0
      %p145 = por %p143, %p144
      %p146 = scmp.ne.s32.totalorder %s138, %s140
      %p147 = scmp.eq.s32.totalorder %s27, 1
      %p148 = por %p146, %p147
      %p149 = scmp.ne.s32.totalorder %s140, %s141
      %p150 = scmp.eq.s32.totalorder %s27, 0
      %p151 = por %p149, %p150
      %p152 = scmp.ne.s32.totalorder %s140, %s141
      %p153 = scmp.eq.s32.totalorder %s28, 1
      %p154 = por %p152, %p153
      %p156 = scmp.ne.s32.totalorder %s141, %s155
      %p157 = scmp.eq.s32.totalorder %s28, 0
      %p158 = por %p156, %p157
      %s160 = sadd.s32 %s159, 1
      %p163 = scmp.eq.s32.totalorder %s22, 1
      %p164 = scmp.ne.s32.totalorder %s159, %s161
      %p165 = scmp.eq.s32.totalorder %s22, 0
      %p166 = por %p164, %p165
      %p167 = scmp.ne.s32.totalorder %s159, %s161
      %p168 = scmp.eq.s32.totalorder %s27, 1
      %p169 = por %p167, %p168
      %p170 = scmp.ne.s32.totalorder %s161, %s162
      %p171 = scmp.eq.s32.totalorder %s27, 0
      %p172 = por %p170, %p171
      %p173 = scmp.ne.s32.totalorder %s161, %s162
      %p174 = scmp.eq.s32.totalorder %s28, 1
      %p175 = por %p173, %p174
      %p177 = scmp.ne.s32.totalorder %s162, %s176
      %p178 = scmp.eq.s32.totalorder %s28, 0
      %p179 = por %p177, %p178
      %s180 = ssub.s32 %s29, %s41
      %s181 = ssub.s32 %s30, %s37
      %s182 = sor.u32 %s180, %s181
      %p183 = scmp.eq.s32.totalorder %s182, 0
      %s185 = sadd.s32 %s184, 1
      %s186 = scalar_select %p183, %s184, %s185
      %p189 = pneg %p183
      %p190 = scmp.eq.s32.totalorder %s22, 1
      %p191 = por %p189, %p190
      %p192 = scmp.ne.s32.totalorder %s184, %s187
      %p193 = scmp.eq.s32.totalorder %s22, 0
      %p194 = por %p192, %p193
      %p195 = scmp.ne.s32.totalorder %s184, %s187
      %p196 = scmp.eq.s32.totalorder %s27, 1
      %p197 = por %p195, %p196
      %p198 = scmp.ne.s32.totalorder %s187, %s188
      %p199 = scmp.eq.s32.totalorder %s27, 0
      %p200 = por %p198, %p199
      %p201 = scmp.ne.s32.totalorder %s187, %s188
      %p202 = scmp.eq.s32.totalorder %s28, 1
      %p203 = por %p201, %p202
      %p205 = scmp.ne.s32.totalorder %s188, %s204
      %p206 = scmp.eq.s32.totalorder %s28, 0
      %p207 = por %p205, %p206
      %p208 = scmp.le.s32.totalorder 1, %s22
      %p209 = scmp.lt.s32.totalorder %s22, 3
      %p210 = pnand %p208, %p209
      %p211 = pneg %p210
      // Predicated region
      $region9: #{tpu_custom_call.1} parent=5 // pred_check
        _
      $region10: #{tpu_custom_call.1} parent=5 // pred_check_branch
        %213 = sbr.rel (%p210) target = $region12
      $region11: #{tpu_custom_call.1} parent=5 // pred_region
        %s214 = ssub.s32 %s22, 1
        // Predicated region
        $region13: #{tpu_custom_call.1} parent=11 // pred_check
          %p215 = pneg %p109
        $region14: #{tpu_custom_call.1} parent=11 // pred_check_branch
          %217 = sbr.rel (%p215) target = $region16
        $region15: #{tpu_custom_call.1} parent=11 // pred_region
          %219 = vsyncadd [#allocation6], 0
          %s220 = sshll.u32 %s2, 4
          %s221 = int_to_ptr.hbm [resolvable:$true] %s220
          %s222 = sshll.u32 [#allocation7], 4
          %s223 = int_to_ptr.vmem [resolvable:$true] %s222
          %228 = dma.hbm_to_vmem [thread:$0]  %s221, 2048, %s223, [#allocation6], 128, 128, 8
        $region16: #{tpu_custom_call.1} parent=11 // pred_fallthru
          _
        // Predicated region
        $region17: #{tpu_custom_call.1} parent=11 // pred_check
          %p229 = pneg %p130
        $region18: #{tpu_custom_call.1} parent=11 // pred_check_branch
          %231 = sbr.rel (%p229) target = $region20
        $region19: #{tpu_custom_call.1} parent=11 // pred_region
          _
        $region20: #{tpu_custom_call.1} parent=11 // pred_fallthru
          _
        // Predicated region
        $region21: #{tpu_custom_call.1} parent=11 // pred_check
          %p232 = pneg %p151
        $region22: #{tpu_custom_call.1} parent=11 // pred_check_branch
          %234 = sbr.rel (%p232) target = $region24
        $region23: #{tpu_custom_call.1} parent=11 // pred_region
          %236 = vsyncadd [#allocation9], 0
          %s237 = sshll.u32 %s4, 4
          %s238 = int_to_ptr.hbm [resolvable:$true] %s237
          %s239 = sshll.u32 [#allocation8], 4
          %s240 = int_to_ptr.vmem [resolvable:$true] %s239
          %245 = dma.hbm_to_vmem [thread:$0]  %s238, 4096, %s240, [#allocation9], 256, 256, 16
        $region24: #{tpu_custom_call.1} parent=11 // pred_fallthru
          _
        // Predicated region
        $region25: #{tpu_custom_call.1} parent=11 // pred_check
          %p246 = pneg %p172
        $region26: #{tpu_custom_call.1} parent=11 // pred_check_branch
          %248 = sbr.rel (%p246) target = $region28
        $region27: #{tpu_custom_call.1} parent=11 // pred_region
          _
        $region28: #{tpu_custom_call.1} parent=11 // pred_fallthru
          _
      $region12: #{tpu_custom_call.1} parent=5 // pred_fallthru
        _
      %p249 = scmp.lt.s32.totalorder %s22, 2
      // Predicated region
      $region29: #{tpu_custom_call.1} parent=5 // pred_check
        %p250 = pneg %p249
      $region30: #{tpu_custom_call.1} parent=5 // pred_check_branch
        %252 = sbr.rel (%p250) target = $region32
      $region31: #{tpu_custom_call.1} parent=5 // pred_region
        // Predicated region
        $region33: #{tpu_custom_call.1} parent=31 // pred_check
          %p253 = pneg %p56
        $region34: #{tpu_custom_call.1} parent=31 // pred_check_branch
          %255 = sbr.rel (%p253) target = $region36
        $region35: #{tpu_custom_call.1} parent=31 // pred_region
          %s256 = sand.u32 %s46, 1
          %s257 = scalar_lea.sflag [#allocation3], %s256
          %s258 = sand.u32 %s46, 1
          %s259 = smul.addr %s258, 8
          %s260 = scalar_lea.vmem [#allocation2], %s259
          %262 = vsyncadd %s257, 0
          %s263 = sadd.s32 %s30, %s29
          %s264 = smul.addr %s263, 8
          %s265 = scalar_lea.hbm %s0, %s264
          %s267 = sshll.u32 %s265, 4
          %s268 = int_to_ptr.hbm [resolvable:$true] %s267
          %s269 = sshll.u32 %s260, 4
          %s270 = int_to_ptr.vmem [resolvable:$true] %s269
          %272 = dma.hbm_to_vmem [thread:$0]  %s268, 128, %s270, %s257
        $region36: #{tpu_custom_call.1} parent=31 // pred_fallthru
          _
        // Predicated region
        $region37: #{tpu_custom_call.1} parent=31 // pred_check
          %p273 = pneg %p82
        $region38: #{tpu_custom_call.1} parent=31 // pred_check_branch
          %275 = sbr.rel (%p273) target = $region40
        $region39: #{tpu_custom_call.1} parent=31 // pred_region
          %s276 = sand.u32 %s22, 1
          %s277 = scalar_lea.sflag [#allocation6], %s276
          %s278 = sand.u32 %s72, 1
          %s279 = smul.addr %s278, 8
          %s280 = scalar_lea.vmem [#allocation5], %s279
          %282 = vsyncadd %s277, 0
          %s283 = smul.addr %s29, 8
          %s284 = scalar_lea.hbm %s1, %s283
          %s286 = sshll.u32 %s284, 4
          %s287 = int_to_ptr.hbm [resolvable:$true] %s286
          %s288 = sshll.u32 %s280, 4
          %s289 = int_to_ptr.vmem [resolvable:$true] %s288
          %291 = dma.hbm_to_vmem [thread:$0]  %s287, 128, %s289, %s277
        $region40: #{tpu_custom_call.1} parent=31 // pred_fallthru
          _
      $region32: #{tpu_custom_call.1} parent=5 // pred_fallthru
        _
      %p292 = scmp.le.s32.totalorder 1, %s22
      %p293 = scmp.lt.s32.totalorder %s22, 3
      %p294 = pnand %p292, %p293
      %p295 = pneg %p294
      // Predicated region
      $region41: #{tpu_custom_call.1} parent=5 // pred_check
        _
      $region42: #{tpu_custom_call.1} parent=5 // pred_check_branch
        %297 = sbr.rel (%p294) target = $region44
      $region43: #{tpu_custom_call.1} parent=5 // pred_region
        %s298 = ssub.s32 %s22, 1
        %s299 = sand.u32 %s49, 1
        %s300 = scalar_lea.sflag [#allocation3], %s299
        %s301 = sand.u32 %s49, 1
        %s302 = smul.addr %s301, 8
        %s303 = scalar_lea.vmem [#allocation2], %s302
        // Predicated region
        $region45: #{tpu_custom_call.1} parent=43 // pred_check
          %p304 = pneg %p62
        $region46: #{tpu_custom_call.1} parent=43 // pred_check_branch
          %306 = sbr.rel (%p304) target = $region48
        $region47: #{tpu_custom_call.1} parent=43 // pred_region
          %308 = dma.done %s300, 128
        $region48: #{tpu_custom_call.1} parent=43 // pred_fallthru
          _
        %s309 = sand.u32 %s27, 1
        %s310 = scalar_lea.sflag [#allocation6], %s309
        %s311 = sand.u32 %s75, 1
        %s312 = smul.addr %s311, 8
        %s313 = scalar_lea.vmem [#allocation5], %s312
        // Predicated region
        $region49: #{tpu_custom_call.1} parent=43 // pred_check
          %p314 = pneg %p88
        $region50: #{tpu_custom_call.1} parent=43 // pred_check_branch
          %316 = sbr.rel (%p314) target = $region52
        $region51: #{tpu_custom_call.1} parent=43 // pred_region
          %318 = dma.done %s310, 128
        $region52: #{tpu_custom_call.1} parent=43 // pred_fallthru
          _
        // Predicated region
        $region53: #{tpu_custom_call.1} parent=43 // pred_check
          %p319 = pneg %p109
        $region54: #{tpu_custom_call.1} parent=43 // pred_check_branch
          %321 = sbr.rel (%p319) target = $region56
        $region55: #{tpu_custom_call.1} parent=43 // pred_region
          %323 = dma.done [#allocation6], 2048
        $region56: #{tpu_custom_call.1} parent=43 // pred_fallthru
          _
        // Predicated region
        $region57: #{tpu_custom_call.1} parent=43 // pred_check
          %p324 = pneg %p151
        $region58: #{tpu_custom_call.1} parent=43 // pred_check_branch
          %326 = sbr.rel (%p324) target = $region60
        $region59: #{tpu_custom_call.1} parent=43 // pred_region
          %328 = dma.done [#allocation9], 4096
        $region60: #{tpu_custom_call.1} parent=43 // pred_fallthru
          _
        %s329 = sand.u32 %s49, 1
        %s330 = scalar_lea.sflag [#allocation3], %s329
        %s331 = sand.u32 %s49, 1
        %s332 = smul.addr %s331, 8
        %s333 = scalar_lea.vmem [#allocation2], %s332
        %p334 = pneg %p62
        %p335 = pneg %p59
        %s336 = sand.u32 %s27, 1
        %s337 = scalar_lea.sflag [#allocation6], %s336
        %s338 = sand.u32 %s75, 1
        %s339 = smul.addr %s338, 8
        %s340 = scalar_lea.vmem [#allocation5], %s339
        %p341 = pneg %p88
        %p342 = pneg %p85
        %p343 = pneg %p109
        %p344 = pneg %p106
        %p345 = pneg %p130
        %p346 = pneg %p127
        %p347 = pneg %p151
        %p348 = pneg %p148
        %p349 = pneg %p172
        %p350 = pneg %p169
        %p351 = pneg %p200
        %p352 = pneg %p197
        %s353 = sand.u32 %s187, 1
        %s354 = scalar_lea.sflag [#allocation4], %s353
        %s355 = sand.u32 %s187, 1
        %s356 = smul.addr %s355, 8
        %s357 = scalar_lea.vmem [#allocation10], %s356
        %v358 = vld [vmem:[%s303] sm:$0xff]
        %v359 = vld [vmem:[%s313] sm:$0xff]
        %v360 = vld [vmem:[#allocation7] sm:$0xff]
        %v361 = vld [vmem:[#allocation7 + $0x8] sm:$0xff]
        %v362 = vld [vmem:[#allocation7 + $0x10] sm:$0xff]
        %v363 = vld [vmem:[#allocation7 + $0x18] sm:$0xff]
        %v364 = vld [vmem:[#allocation7 + $0x20] sm:$0xff]
        %v365 = vld [vmem:[#allocation7 + $0x28] sm:$0xff]
        %v366 = vld [vmem:[#allocation7 + $0x30] sm:$0xff]
        %v367 = vld [vmem:[#allocation7 + $0x38] sm:$0xff]
        %v368 = vld [vmem:[#allocation7 + $0x40] sm:$0xff]
        %v369 = vld [vmem:[#allocation7 + $0x48] sm:$0xff]
        %v370 = vld [vmem:[#allocation7 + $0x50] sm:$0xff]
        %v371 = vld [vmem:[#allocation7 + $0x58] sm:$0xff]
        %v372 = vld [vmem:[#allocation7 + $0x60] sm:$0xff]
        %v373 = vld [vmem:[#allocation7 + $0x68] sm:$0xff]
        %v374 = vld [vmem:[#allocation7 + $0x70] sm:$0xff]
        %v375 = vld [vmem:[#allocation7 + $0x78] sm:$0xff]
        %v376 = vld [vmem:[%s3] sm:$0x1]
        %v378 = vperm.slane %v376, 0
        %380 = vmatpush.msra.mxu0 %v375
        %381 = vmatpush.msra.mxu0 %v374
        %382 = vmatpush.msra.mxu0 %v373
        %383 = vmatpush.msra.mxu0 %v372
        %384 = vmatpush.msra.mxu0 %v371
        %385 = vmatpush.msra.mxu0 %v370
        %386 = vmatpush.msra.mxu0 %v369
        %387 = vmatpush.msra.mxu0 %v368
        %388 = vmatpush.msra.mxu0 %v367
        %389 = vmatpush.msra.mxu0 %v366
        %390 = vmatpush.msra.mxu0 %v365
        %391 = vmatpush.msra.mxu0 %v364
        %392 = vmatpush.msra.mxu0 %v363
        %393 = vmatpush.msra.mxu0 %v362
        %394 = vmatpush.msra.mxu0 %v361
        %395 = vmatpush.msra.mxu0 %v360
        %396 = vmatmul.f32.gmra.mxu0 %v358
        %v397 = vpop.f32.mrf.mxu0
        %v398 = vadd.f32 %v378, %v397
        %399 = vdwg.mxu0
        %v400 = vmul.f32 %v398, 0.17677669
        %v401 = vld [vmem:[#allocation8] sm:$0xff]
        %v402 = vld [vmem:[#allocation8 + $0x8] sm:$0xff]
        %v403 = vld [vmem:[#allocation8 + $0x10] sm:$0xff]
        %v404 = vld [vmem:[#allocation8 + $0x18] sm:$0xff]
        %v405 = vld [vmem:[#allocation8 + $0x20] sm:$0xff]
        %v406 = vld [vmem:[#allocation8 + $0x28] sm:$0xff]
        %v407 = vld [vmem:[#allocation8 + $0x30] sm:$0xff]
        %v408 = vld [vmem:[#allocation8 + $0x38] sm:$0xff]
        %v409 = vld [vmem:[#allocation8 + $0x40] sm:$0xff]
        %v410 = vld [vmem:[#allocation8 + $0x48] sm:$0xff]
        %v411 = vld [vmem:[#allocation8 + $0x50] sm:$0xff]
        %v412 = vld [vmem:[#allocation8 + $0x58] sm:$0xff]
        %v413 = vld [vmem:[#allocation8 + $0x60] sm:$0xff]
        %v414 = vld [vmem:[#allocation8 + $0x68] sm:$0xff]
        %v415 = vld [vmem:[#allocation8 + $0x70] sm:$0xff]
        %v416 = vld [vmem:[#allocation8 + $0x78] sm:$0xff]
        %v417 = vld [vmem:[#allocation8 + $0x80] sm:$0xff]
        %v418 = vld [vmem:[#allocation8 + $0x88] sm:$0xff]
        %v419 = vld [vmem:[#allocation8 + $0x90] sm:$0xff]
        %v420 = vld [vmem:[#allocation8 + $0x98] sm:$0xff]
        %v421 = vld [vmem:[#allocation8 + $0xa0] sm:$0xff]
        %v422 = vld [vmem:[#allocation8 + $0xa8] sm:$0xff]
        %v423 = vld [vmem:[#allocation8 + $0xb0] sm:$0xff]
        %v424 = vld [vmem:[#allocation8 + $0xb8] sm:$0xff]
        %v425 = vld [vmem:[#allocation8 + $0xc0] sm:$0xff]
        %v426 = vld [vmem:[#allocation8 + $0xc8] sm:$0xff]
        %v427 = vld [vmem:[#allocation8 + $0xd0] sm:$0xff]
        %v428 = vld [vmem:[#allocation8 + $0xd8] sm:$0xff]
        %v429 = vld [vmem:[#allocation8 + $0xe0] sm:$0xff]
        %v430 = vld [vmem:[#allocation8 + $0xe8] sm:$0xff]
        %v431 = vld [vmem:[#allocation8 + $0xf0] sm:$0xff]
        %v432 = vld [vmem:[#allocation8 + $0xf8] sm:$0xff]
        %v433 = vld [vmem:[%s5] sm:$0x3]
        %v435 = vperm.slane %v433, 0
        %v436 = vperm.slane %v433, 1
        %439 = vmatpush.msra.mxu0 %v431
        %440 = vmatpush.msra.mxu0 %v429
        %441 = vmatpush.msra.mxu0 %v427
        %442 = vmatpush.msra.mxu0 %v425
        %443 = vmatpush.msra.mxu0 %v423
        %444 = vmatpush.msra.mxu0 %v421
        %445 = vmatpush.msra.mxu0 %v419
        %446 = vmatpush.msra.mxu0 %v417
        %447 = vmatpush.msra.mxu0 %v415
        %448 = vmatpush.msra.mxu0 %v413
        %449 = vmatpush.msra.mxu0 %v411
        %450 = vmatpush.msra.mxu0 %v409
        %451 = vmatpush.msra.mxu0 %v407
        %452 = vmatpush.msra.mxu0 %v405
        %453 = vmatpush.msra.mxu0 %v403
        %454 = vmatpush.msra.mxu0 %v401
        %455 = vmatmul.f32.gmra.mxu0 %v359
        %v456 = vpop.f32.mrf.mxu0
        %v457 = vadd.f32 %v435, %v456
        %458 = vdwg.mxu0
        %459 = vmatpush.msra.mxu0 %v432
        %460 = vmatpush.msra.mxu0 %v430
        %461 = vmatpush.msra.mxu0 %v428
        %462 = vmatpush.msra.mxu0 %v426
        %463 = vmatpush.msra.mxu0 %v424
        %464 = vmatpush.msra.mxu0 %v422
        %465 = vmatpush.msra.mxu0 %v420
        %466 = vmatpush.msra.mxu0 %v418
        %467 = vmatpush.msra.mxu0 %v416
        %468 = vmatpush.msra.mxu0 %v414
        %469 = vmatpush.msra.mxu0 %v412
        %470 = vmatpush.msra.mxu0 %v410
        %471 = vmatpush.msra.mxu0 %v408
        %472 = vmatpush.msra.mxu0 %v406
        %473 = vmatpush.msra.mxu0 %v404
        %474 = vmatpush.msra.mxu0 %v402
        %475 = vmatmul.f32.gmra.mxu0 %v359
        %v476 = vpop.f32.mrf.mxu0
        %v477 = vadd.f32 %v436, %v476
        %478 = vdwg.mxu0
        %479 = vmatpush.xpose.msra.mxu0 0.0
        %480 = vmatpush.xpose.msra.mxu0 0.0
        %481 = vmatpush.xpose.msra.mxu0 0.0
        %482 = vmatpush.xpose.msra.mxu0 0.0
        %483 = vmatpush.xpose.msra.mxu0 0.0
        %484 = vmatpush.xpose.msra.mxu0 0.0
        %485 = vmatpush.xpose.msra.mxu0 0.0
        %486 = vmatpush.xpose.msra.mxu0 0.0
        %487 = vmatpush.xpose.msra.mxu0 0.0
        %488 = vmatpush.xpose.msra.mxu0 0.0
        %489 = vmatpush.xpose.msra.mxu0 0.0
        %490 = vmatpush.xpose.msra.mxu0 0.0
        %491 = vmatpush.xpose.msra.mxu0 0.0
        %492 = vmatpush.xpose.msra.mxu0 0.0
        %493 = vmatpush.xpose.msra.mxu0 0.0
        %494 = vmatpush.xpose.msra.mxu0 %v457
        %495 = vmatmul.f32.gmra.mxu0 %v400
        %v496 = vpop.f32.mrf.mxu0
        %v497 = vadd.f32 0.0, %v496
        %498 = vdwg.mxu0
        %v499 = vlaneseq
        %v500 = vshrl.u32 %v499, 7
        %s501 = smul.u32 %s32, 8
        %v502 = vstv %s501
        %v503 = vadd.s32 %v500, %v502
        %v504 = vlaneseq
        %v505 = vand.u32 %v504, 127
        %vm506 = vcmp.le.s32.totalorder %v505, %v503
        %v507 = vsel %vm506, %v497, -inf
        %vm508 = vcmask 64512
        %v509 = vsel %vm508, %v507, -inf
        %510 = vmax.xlane.f32.xlu0 %v509
        %v511 = vpop.xlane.xlu0 %510
        %v512 = vsub.f32 %v507, %v511
        %v513 = vmul.f32 %v512, 1.442695
        %v514 = vpow.pop %v513
        %v515 = vsel %vm508, %v514, 0.0
        %516 = vadd.xlane.f32.xlu0 %v515
        %v517 = vpop.xlane.xlu0 %516
        %v518 = vrcp.pop %v517
        %v519 = vmul.f32 %v514, %v518
        %v521 = vsel %vm508, %v519, 0
        %523 = vmatpush.msra.mxu0 0.0
        %524 = vmatpush.msra.mxu0 0.0
        %525 = vmatpush.msra.mxu0 0.0
        %526 = vmatpush.msra.mxu0 0.0
        %527 = vmatpush.msra.mxu0 0.0
        %528 = vmatpush.msra.mxu0 0.0
        %529 = vmatpush.msra.mxu0 0.0
        %530 = vmatpush.msra.mxu0 0.0
        %531 = vmatpush.msra.mxu0 0.0
        %532 = vmatpush.msra.mxu0 0.0
        %533 = vmatpush.msra.mxu0 0.0
        %534 = vmatpush.msra.mxu0 0.0
        %535 = vmatpush.msra.mxu0 0.0
        %536 = vmatpush.msra.mxu0 0.0
        %537 = vmatpush.msra.mxu0 0.0
        %538 = vmatpush.msra.mxu0 %v477
        %539 = vmatmul.f32.gmra.mxu0 %v521
        %v540 = vpop.f32.mrf.mxu0
        %v541 = vadd.f32 0.0, %v540
        %542 = vdwg.mxu0
        %543 = vst [vmem:[%s357] sm:$0xff] %v541
        %s544 = sand.u32 %s187, 1
        %s545 = scalar_lea.sflag [#allocation4], %s544
        %s546 = sand.u32 %s187, 1
        %s547 = smul.addr %s546, 8
        %s548 = scalar_lea.vmem [#allocation10], %s547
        // Predicated region
        $region61: #{tpu_custom_call.1} parent=43 // pred_check
          %p549 = pneg %p197
        $region62: #{tpu_custom_call.1} parent=43 // pred_check_branch
          %551 = sbr.rel (%p549) target = $region64
        $region63: #{tpu_custom_call.1} parent=43 // pred_region
          %553 = vsyncadd %s545, 0
          %s554 = sadd.s32 %s32, %s31
          %s555 = smul.addr %s554, 8
          %s556 = scalar_lea.hbm %s6, %s555
          %s558 = sshll.u32 %s548, 4
          %s559 = int_to_ptr.vmem [resolvable:$true] %s558
          %s560 = sshll.u32 %s556, 4
          %s561 = int_to_ptr.hbm [resolvable:$true] %s560
          %563 = dma.vmem_to_hbm [thread:$0]  %s559, 128, %s561, %s545
        $region64: #{tpu_custom_call.1} parent=43 // pred_fallthru
          _
      $region44: #{tpu_custom_call.1} parent=5 // pred_fallthru
        _
      %p564 = scmp.le.s32.totalorder 2, %s22
      // Predicated region
      $region65: #{tpu_custom_call.1} parent=5 // pred_check
        %p565 = pneg %p564
      $region66: #{tpu_custom_call.1} parent=5 // pred_check_branch
        %567 = sbr.rel (%p565) target = $region68
      $region67: #{tpu_custom_call.1} parent=5 // pred_region
        %s568 = ssub.s32 %s22, 2
        // Predicated region
        $region69: #{tpu_custom_call.1} parent=67 // pred_check
          %p569 = pneg %p203
        $region70: #{tpu_custom_call.1} parent=67 // pred_check_branch
          %571 = sbr.rel (%p569) target = $region72
        $region71: #{tpu_custom_call.1} parent=67 // pred_region
          %s572 = sand.u32 %s188, 1
          %s573 = scalar_lea.sflag [#allocation4], %s572
          %s574 = sand.u32 %s188, 1
          %s575 = smul.addr %s574, 8
          %s576 = scalar_lea.vmem [#allocation10], %s575
          %578 = dma.done %s573, 128
        $region72: #{tpu_custom_call.1} parent=67 // pred_fallthru
          _
      $region68: #{tpu_custom_call.1} parent=5 // pred_fallthru
        _
    $region6: #{tpu_custom_call.1} parent=1 // loop_footer
      %s26 = sadd.s32 1, %s22
    $region7: #{tpu_custom_call.1} parent=1 // loop_footer_branch
      %21 = sbr.rel target = $region3
    $region8: #{tpu_custom_call.1} parent=1 // loop_exit
      _
    %579 = vsyncpa [#allocation3], 1
    %s580 = scalar_lea.sflag [#allocation3], 1
    %581 = vsyncpa %s580, 1
    %582 = vsyncpa [#allocation6], 1
    %s583 = scalar_lea.sflag [#allocation6], 1
    %584 = vsyncpa %s583, 1
    %585 = vsyncpa [#allocation9], 1
    %586 = vsyncpa [#allocation4], 1
    %s587 = scalar_lea.sflag [#allocation4], 1
    %588 = vsyncpa %s587, 1

</llo_original>
